<compile_context>
chip_gen: v5e
topology: v5e:2x2
jax: 0.10.0
libtpu: 0.0.40
codegen_flags: <defaults>
</compile_context>

<pallas_src>
import jax
import jax.numpy as jnp
import numpy as np
from jax.experimental import pallas as pl
from jax.experimental.pallas import tpu as pltpu

NODE_FEATURE_DIM = 8                       # `out_channels` in the original file
INPUT_DIM = 4 * NODE_FEATURE_DIM           # 32
NUM_HEADS = 4


def _compute_new_dim(input_dim, num_heads):
    new_dim = input_dim
    while new_dim % num_heads != 0:
        new_dim += 1
    return new_dim


NEW_DIM = _compute_new_dim(INPUT_DIM, NUM_HEADS)   # 32
HEAD_DIM = NEW_DIM // NUM_HEADS                    # 8
BIG = NUM_HEADS * NEW_DIM                          # 128: per-sample lane L = h*32 + g*8 + d
NSC = NUM_HEADS * NUM_HEADS                        # 16 per-sample score lanes

PACK = 128 // INPUT_DIM                            # 4 samples per 128-lane packed row
PIN = PACK * INPUT_DIM                             # 128 packed input lanes
PBIG = PACK * BIG                                  # 512 packed "big" lanes: s*128 + L
PSC = PACK * NSC                                   # 64 packed score lanes:  g*16 + s*4 + h
SLAB = PACK * NUM_HEADS                            # 16: softmax slab width (one g per slab)


def _packed_structure_matrices():
    """Constant 0/1 matrices implementing head bookkeeping on the MXU (packed form)."""
    H, D, ND, P = NUM_HEADS, HEAD_DIM, NEW_DIM, PACK
    e_q = np.zeros((ND, BIG), np.float32)       # q[h,d]  -> lane (h,g,d), all g
    e_k = np.zeros((ND, BIG), np.float32)       # k[g,d]  -> lane (h,g,d), all h
    c_merge = np.zeros((BIG, ND), np.float32)   # sum_g lane (h,g,d) -> h*D + d
    seg_p = np.zeros((PBIG, PSC), np.float32)   # sum_d packed lane -> score lane g*16+s*4+h
    for h in range(H):
        for g in range(H):
            for d in range(D):
                L = h * ND + g * D + d
                e_q[h * D + d, L] = 1.0
                e_k[g * D + d, L] = 1.0
                c_merge[L, h * D + d] = 1.0
                for s in range(P):
                    seg_p[s * BIG + L, g * SLAB + s * H + h] = 1.0
    return e_q, e_k, c_merge, seg_p


def pack_params(params):
    """Fold scale / head-expansion / head-merge / 4-sample packing into the weights.

    params are the logical (in_features, out_features) weights:
      wq (Q of B_features), wk (K of A_features), wv (V of A_features), wo.
    (In the PyTorch module these correspond to q_linear, v_linear, k_linear,
    out_linear respectively, transposed.)  Host-side, one-off.
    """
    wq, bq, wk, bk, wv, bv, wo, bo = [np.asarray(p, np.float32) for p in params]
    e_q, e_k, c_merge, seg_p = _packed_structure_matrices()
    scale = np.float32(1.0 / np.sqrt(HEAD_DIM))

    wq_big = (wq * scale) @ e_q                         # (32, 128)
    bq_big = (bq * scale) @ e_q                         # (1, 128)
    wk_big, bk_big = wk @ e_k, bk @ e_k
    wv_big, bv_big = wv @ e_k, bv @ e_k
    wo_big = c_merge @ wo                               # (128, 32), head-merge fused

    def bdiag(m):
        r, c = m.shape
        out = np.zeros((PACK * r, PACK * c), np.float32)
        for s in range(PACK):
            out[s * r:(s + 1) * r, s * c:(s + 1) * c] = m
        return out

    wq_p = bdiag(wq_big)                                                 # (128, 512)
    bq_p = np.tile(bq_big, (1, PACK))                                    # (1, 512)
    wkv_p = np.concatenate([bdiag(wk_big), bdiag(wv_big)], axis=1)       # (128, 1024)
    bkv_p = np.concatenate([np.tile(bk_big, (1, PACK)),
                            np.tile(bv_big, (1, PACK))], axis=1)         # (1, 1024)
    ew_p = seg_p.T.copy()                                                # (64, 512)
    wo_p = bdiag(wo_big)                                                 # (512, 128)
    bo_p = np.tile(bo, (1, PACK))                                        # (1, 128)
    return tuple(jnp.asarray(x) for x in
                 (wq_p, bq_p, wkv_p, bkv_p, seg_p, ew_p, wo_p, bo_p))


def mhca_kernel(a_ref, b_ref, wq_ref, bq_ref, wkv_ref, bkv_ref,
                seg_ref, ew_ref, wo_ref, bo_ref, out_ref):
    a = a_ref[...]          # (T, 128): 4 packed A_features rows/step -> K, V
    bfeat = b_ref[...]      # (T, 128): 4 packed B_features rows/step -> Q

    # Fused projection + per-head lane expansion (1/sqrt(Dh) folded into Wq/bq).
    big_q = jnp.dot(bfeat, wq_ref[...],
                    preferred_element_type=jnp.float32) + bq_ref[...]    # (T, 512)
    big_kv = jnp.dot(a, wkv_ref[...],
                     preferred_element_type=jnp.float32) + bkv_ref[...]  # (T, 1024)
    big_k = big_kv[:, :PBIG]                                             # (T, 512)
    big_v = big_kv[:, PBIG:]                                             # (T, 512)

    # All 64 head-pair dot products (4 samples x 4x4 heads) via one segment-sum
    # matmul: scores[:, g*16 + s*4 + h] = <q_h, k_g>/sqrt(Dh) for packed sample s.
    scores = jnp.dot(big_q * big_k, seg_ref[...],
                     preferred_element_type=jnp.float32)                 # (T, 64)

    # Softmax over the key-head axis g.  Layout is g-major, so the g-reduction
    # is 3 elementwise ops on contiguous (T, 16) slices — no cross-lane XLU work.
    m = scores[:, 0:SLAB]
    for g in range(1, NUM_HEADS):
        m = jnp.maximum(m, scores[:, g * SLAB:(g + 1) * SLAB])           # (T, 16)
    e = jnp.exp(scores - jnp.concatenate([m] * NUM_HEADS, axis=-1))      # (T, 64)
    denom = e[:, 0:SLAB]
    for g in range(1, NUM_HEADS):
        denom = denom + e[:, g * SLAB:(g + 1) * SLAB]                    # (T, 16)
    # Exact reciprocal keeps the tight tolerance; pl.reciprocal(..., approx=True)
    # would move it to the EUP at ~1e-3 relative error if that were acceptable.
    inv = 1.0 / denom                                                    # (T, 16)
    w = e * jnp.concatenate([inv] * NUM_HEADS, axis=-1)                  # (T, 64)

    # Broadcast softmax weights over head_dim (MXU), weight the values, and apply
    # the output projection with the head-merge pre-fused (Wo_pack = blkdiag(C@Wo)).
    big_w = jnp.dot(w, ew_ref[...], preferred_element_type=jnp.float32)  # (T, 512)
    out = jnp.dot(big_w * big_v, wo_ref[...],
                  preferred_element_type=jnp.float32) + bo_ref[...]      # (T, 128)
    out_ref[...] = out.astype(out_ref.dtype)                             # lane-dense store


def multi_head_cross_attention(a_features, b_features, packed_params, *, tile_rows=256):
    """a_features, b_features: (B, INPUT_DIM) f32 -> (B, INPUT_DIM) f32."""
    (wq_p, bq_p, wkv_p, bkv_p, seg_p, ew_p, wo_p, bo_p) = packed_params
    B = a_features.shape[0]

    # Packed rows needed (4 samples each).  Tile: default 256 rows (=1024 samples)
    # keeps per-step VMEM (~7 MiB incl. intermediates) under the 16 MiB v5e scoped
    # default and hides the per-step overhead under compute; clamp for tiny batches.
    rows = pl.cdiv(B, PACK)
    tile_rows = min(tile_rows, max(8, ((rows + 7) // 8) * 8))
    n_tiles = pl.cdiv(rows, tile_rows)
    rows_pad = n_tiles * tile_rows
    b_pad = rows_pad * PACK
    if b_pad != B:
        pad = ((0, b_pad - B), (0, 0))
        a_features = jnp.pad(a_features, pad)
        b_features = jnp.pad(b_features, pad)

    # Free row-major reshapes: (b_pad, 32) -> (rows_pad, 128) lane-dense slabs.
    a_p = a_features.reshape(rows_pad, PIN)
    b_p = b_features.reshape(rows_pad, PIN)

    row_spec = pl.BlockSpec((tile_rows, PIN), lambda i: (i, 0))

    def const_spec(arr):
        # Weights / structure matrices: full-array block, constant index map ->
        # fetched once, VMEM-resident across grid steps.
        return pl.BlockSpec(arr.shape, lambda i: (0, 0))

    out = pl.pallas_call(
        mhca_kernel,
        out_shape=jax.ShapeDtypeStruct((rows_pad, PIN), jnp.float32),
        grid=(n_tiles,),
        in_specs=[
            row_spec,                 # A_features packed tile
            row_spec,                 # B_features packed tile
            const_spec(wq_p), const_spec(bq_p),
            const_spec(wkv_p), const_spec(bkv_p),
            const_spec(seg_p), const_spec(ew_p),
            const_spec(wo_p), const_spec(bo_p),
        ],
        out_specs=row_spec,
        compiler_params=pltpu.CompilerParams(
            dimension_semantics=("parallel",)),   # megacore split on v7x
    )(a_p, b_p, wq_p, bq_p, wkv_p, bkv_p, seg_p, ew_p, wo_p, bo_p)

    return out.reshape(b_pad, INPUT_DIM)[:B]


def reference(a_features, b_features, params):
    """Pure-JAX mirror of the PyTorch forward."""
    wq, bq, wk, bk, wv, bv, wo, bo = params
    B = a_features.shape[0]
    q = (b_features @ wq + bq).reshape(B, NUM_HEADS, HEAD_DIM)
    k = (a_features @ wk + bk).reshape(B, NUM_HEADS, HEAD_DIM)
    v = (a_features @ wv + bv).reshape(B, NUM_HEADS, HEAD_DIM)
    scores = jnp.einsum('bhd,bgd->bhg', q, k) / jnp.sqrt(jnp.float32(HEAD_DIM))
    attn = jax.nn.softmax(scores, axis=-1)
    att = jnp.einsum('bhg,bgd->bhd', attn, v).reshape(B, 1, NEW_DIM)
    out = att @ wo + bo
    return out[:, 0, :]


def init_params(key):
    ks = jax.random.split(key, 8)

    def lin(kw, kb, fan_in, fan_out):
        w = jax.random.normal(kw, (fan_in, fan_out), jnp.float32) * 0.1
        b = jax.random.normal(kb, (1, fan_out), jnp.float32) * 0.01
        return w, b

    wq, bq = lin(ks[0], ks[1], INPUT_DIM, NEW_DIM)   # q_linear  (applied to B_features)
    wk, bk = lin(ks[2], ks[3], INPUT_DIM, NEW_DIM)   # v_linear  (used as K of A_features)
    wv, bv = lin(ks[4], ks[5], INPUT_DIM, NEW_DIM)   # k_linear  (used as V of A_features)
    wo, bo = lin(ks[6], ks[7], NEW_DIM, INPUT_DIM)   # out_linear
    return (wq, bq, wk, bk, wv, bv, wo, bo)


if __name__ == "__main__":
    key = jax.random.PRNGKey(0)
    k_a, k_b, k_p = jax.random.split(key, 3)
    B = 16
    a_feat = jax.random.normal(k_a, (B, INPUT_DIM), jnp.float32)
    b_feat = jax.random.normal(k_b, (B, INPUT_DIM), jnp.float32)
    params = init_params(k_p)
    packed = pack_params(params)

    out = multi_head_cross_attention(a_feat, b_feat, packed)
    out = jax.block_until_ready(out)

    ref = jax.block_until_ready(reference(a_feat, b_feat, params))
    assert out.shape == (B, INPUT_DIM)
    assert jnp.allclose(out, ref, rtol=5e-5, atol=5e-5), (
        f"max abs err {jnp.max(jnp.abs(out - ref))}")
    print("KERNEL_OK")
</pallas_src>

<mosaic_0001>
module attributes {stable_mosaic.version = 11 : i64} {
  func.func @mhca_kernel(%arg0: i32, %arg1: memref<8x128xf32, #tpu.memory_space<vmem>>, %arg2: memref<8x128xf32, #tpu.memory_space<vmem>>, %arg3: memref<128x512xf32, #tpu.memory_space<vmem>>, %arg4: memref<1x512xf32, #tpu.memory_space<vmem>>, %arg5: memref<128x1024xf32, #tpu.memory_space<vmem>>, %arg6: memref<1x1024xf32, #tpu.memory_space<vmem>>, %arg7: memref<512x64xf32, #tpu.memory_space<vmem>>, %arg8: memref<64x512xf32, #tpu.memory_space<vmem>>, %arg9: memref<512x128xf32, #tpu.memory_space<vmem>>, %arg10: memref<1x128xf32, #tpu.memory_space<vmem>>, %arg11: memref<8x128xf32, #tpu.memory_space<vmem>>) attributes {dimension_semantics = [#tpu.dimension_semantics<parallel>], iteration_bounds = array<i64: 1>, scalar_prefetch = 0 : i64, scratch_operands = 0 : i64, tpu.core_type = #tpu.core_type<tc>, window_params = [{transform_indices = @transform_0, window_bounds = array<i64: 8, 128>}, {transform_indices = @transform_1, window_bounds = array<i64: 8, 128>}, {pipeline_mode = #tpu.pipeline_mode<synchronous>, transform_indices = @transform_2, window_bounds = array<i64: 128, 512>}, {pipeline_mode = #tpu.pipeline_mode<synchronous>, transform_indices = @transform_3, window_bounds = array<i64: 1, 512>}, {pipeline_mode = #tpu.pipeline_mode<synchronous>, transform_indices = @transform_4, window_bounds = array<i64: 128, 1024>}, {pipeline_mode = #tpu.pipeline_mode<synchronous>, transform_indices = @transform_5, window_bounds = array<i64: 1, 1024>}, {pipeline_mode = #tpu.pipeline_mode<synchronous>, transform_indices = @transform_6, window_bounds = array<i64: 512, 64>}, {pipeline_mode = #tpu.pipeline_mode<synchronous>, transform_indices = @transform_7, window_bounds = array<i64: 64, 512>}, {pipeline_mode = #tpu.pipeline_mode<synchronous>, transform_indices = @transform_8, window_bounds = array<i64: 512, 128>}, {pipeline_mode = #tpu.pipeline_mode<synchronous>, transform_indices = @transform_9, window_bounds = array<i64: 1, 128>}, {transform_indices = @transform_10, window_bounds = array<i64: 8, 128>}]} {
    %c0 = arith.constant 0 : index
    %c0_0 = arith.constant 0 : index
    %0 = vector.load %arg1[%c0, %c0_0] : memref<8x128xf32, #tpu.memory_space<vmem>>, vector<8x128xf32>
    %c0_1 = arith.constant 0 : index
    %c0_2 = arith.constant 0 : index
    %1 = vector.load %arg2[%c0_1, %c0_2] : memref<8x128xf32, #tpu.memory_space<vmem>>, vector<8x128xf32>
    %c0_3 = arith.constant 0 : index
    %c0_4 = arith.constant 0 : index
    %2 = vector.load %arg3[%c0_3, %c0_4] : memref<128x512xf32, #tpu.memory_space<vmem>>, vector<128x512xf32>
    %cst = arith.constant dense<0.000000e+00> : vector<8x512xf32>
    %3 = tpu.matmul %1, %2, %cst {dimension_numbers = #tpu.dot_dimension_numbers<[1], [0], [0], [1], [0, 0, 1, 1], [], []>} : vector<8x128xf32>, vector<128x512xf32>, vector<8x512xf32> -> vector<8x512xf32>
    %c0_5 = arith.constant 0 : index
    %c0_6 = arith.constant 0 : index
    %4 = vector.load %arg4[%c0_5, %c0_6] : memref<1x512xf32, #tpu.memory_space<vmem>>, vector<1x512xf32>
    %5 = vector.broadcast %4 : vector<1x512xf32> to vector<8x512xf32>
    %6 = arith.addf %3, %5 : vector<8x512xf32>
    %c0_7 = arith.constant 0 : index
    %c0_8 = arith.constant 0 : index
    %7 = vector.load %arg5[%c0_7, %c0_8] : memref<128x1024xf32, #tpu.memory_space<vmem>>, vector<128x1024xf32>
    %cst_9 = arith.constant dense<0.000000e+00> : vector<8x1024xf32>
    %8 = tpu.matmul %0, %7, %cst_9 {dimension_numbers = #tpu.dot_dimension_numbers<[1], [0], [0], [1], [0, 0, 1, 1], [], []>} : vector<8x128xf32>, vector<128x1024xf32>, vector<8x1024xf32> -> vector<8x1024xf32>
    %c0_10 = arith.constant 0 : index
    %c0_11 = arith.constant 0 : index
    %9 = vector.load %arg6[%c0_10, %c0_11] : memref<1x1024xf32, #tpu.memory_space<vmem>>, vector<1x1024xf32>
    %10 = vector.broadcast %9 : vector<1x1024xf32> to vector<8x1024xf32>
    %11 = arith.addf %8, %10 : vector<8x1024xf32>
    %12 = vector.extract_strided_slice %11 {offsets = [0, 0], sizes = [8, 512], strides = [1, 1]} : vector<8x1024xf32> to vector<8x512xf32>
    %13 = vector.extract_strided_slice %11 {offsets = [0, 512], sizes = [8, 512], strides = [1, 1]} : vector<8x1024xf32> to vector<8x512xf32>
    %14 = arith.mulf %6, %12 : vector<8x512xf32>
    %c0_12 = arith.constant 0 : index
    %c0_13 = arith.constant 0 : index
    %15 = vector.load %arg7[%c0_12, %c0_13] : memref<512x64xf32, #tpu.memory_space<vmem>>, vector<512x64xf32>
    %cst_14 = arith.constant dense<0.000000e+00> : vector<8x64xf32>
    %16 = tpu.matmul %14, %15, %cst_14 {dimension_numbers = #tpu.dot_dimension_numbers<[1], [0], [0], [1], [0, 0, 1, 1], [], []>} : vector<8x512xf32>, vector<512x64xf32>, vector<8x64xf32> -> vector<8x64xf32>
    %17 = vector.extract_strided_slice %16 {offsets = [0, 0], sizes = [8, 16], strides = [1, 1]} : vector<8x64xf32> to vector<8x16xf32>
    %18 = vector.extract_strided_slice %16 {offsets = [0, 16], sizes = [8, 16], strides = [1, 1]} : vector<8x64xf32> to vector<8x16xf32>
    %19 = arith.maximumf %17, %18 : vector<8x16xf32>
    %20 = vector.extract_strided_slice %16 {offsets = [0, 32], sizes = [8, 16], strides = [1, 1]} : vector<8x64xf32> to vector<8x16xf32>
    %21 = arith.maximumf %19, %20 : vector<8x16xf32>
    %22 = vector.extract_strided_slice %16 {offsets = [0, 48], sizes = [8, 16], strides = [1, 1]} : vector<8x64xf32> to vector<8x16xf32>
    %23 = arith.maximumf %21, %22 : vector<8x16xf32>
    %24 = tpu.concatenate %23, %23, %23, %23 in 1 : vector<8x16xf32>, vector<8x16xf32>, vector<8x16xf32>, vector<8x16xf32> -> vector<8x64xf32>
    %25 = arith.subf %16, %24 : vector<8x64xf32>
    %26 = math.exp %25 : vector<8x64xf32>
    %27 = vector.extract_strided_slice %26 {offsets = [0, 0], sizes = [8, 16], strides = [1, 1]} : vector<8x64xf32> to vector<8x16xf32>
    %28 = vector.extract_strided_slice %26 {offsets = [0, 16], sizes = [8, 16], strides = [1, 1]} : vector<8x64xf32> to vector<8x16xf32>
    %29 = arith.addf %27, %28 : vector<8x16xf32>
    %30 = vector.extract_strided_slice %26 {offsets = [0, 32], sizes = [8, 16], strides = [1, 1]} : vector<8x64xf32> to vector<8x16xf32>
    %31 = arith.addf %29, %30 : vector<8x16xf32>
    %32 = vector.extract_strided_slice %26 {offsets = [0, 48], sizes = [8, 16], strides = [1, 1]} : vector<8x64xf32> to vector<8x16xf32>
    %33 = arith.addf %31, %32 : vector<8x16xf32>
    %cst_15 = arith.constant 1.000000e+00 : f32
    %34 = vector.broadcast %cst_15 : f32 to vector<8x16xf32>
    %35 = arith.divf %34, %33 : vector<8x16xf32>
    %36 = tpu.concatenate %35, %35, %35, %35 in 1 : vector<8x16xf32>, vector<8x16xf32>, vector<8x16xf32>, vector<8x16xf32> -> vector<8x64xf32>
    %37 = arith.mulf %26, %36 : vector<8x64xf32>
    %c0_16 = arith.constant 0 : index
    %c0_17 = arith.constant 0 : index
    %38 = vector.load %arg8[%c0_16, %c0_17] : memref<64x512xf32, #tpu.memory_space<vmem>>, vector<64x512xf32>
    %cst_18 = arith.constant dense<0.000000e+00> : vector<8x512xf32>
    %39 = tpu.matmul %37, %38, %cst_18 {dimension_numbers = #tpu.dot_dimension_numbers<[1], [0], [0], [1], [0, 0, 1, 1], [], []>} : vector<8x64xf32>, vector<64x512xf32>, vector<8x512xf32> -> vector<8x512xf32>
    %40 = arith.mulf %39, %13 : vector<8x512xf32>
    %c0_19 = arith.constant 0 : index
    %c0_20 = arith.constant 0 : index
    %41 = vector.load %arg9[%c0_19, %c0_20] : memref<512x128xf32, #tpu.memory_space<vmem>>, vector<512x128xf32>
    %cst_21 = arith.constant dense<0.000000e+00> : vector<8x128xf32>
    %42 = tpu.matmul %40, %41, %cst_21 {dimension_numbers = #tpu.dot_dimension_numbers<[1], [0], [0], [1], [0, 0, 1, 1], [], []>} : vector<8x512xf32>, vector<512x128xf32>, vector<8x128xf32> -> vector<8x128xf32>
    %c0_22 = arith.constant 0 : index
    %c0_23 = arith.constant 0 : index
    %43 = vector.load %arg10[%c0_22, %c0_23] : memref<1x128xf32, #tpu.memory_space<vmem>>, vector<1x128xf32>
    %44 = vector.broadcast %43 : vector<1x128xf32> to vector<8x128xf32>
    %45 = arith.addf %42, %44 : vector<8x128xf32>
    %c0_24 = arith.constant 0 : index
    %c0_25 = arith.constant 0 : index
    %46 = vector.load %arg11[%c0_24, %c0_25] : memref<8x128xf32, #tpu.memory_space<vmem>>, vector<8x128xf32>
    tpu.vector_store %arg11[%c0_24, %c0_25], %45 {strides = array<i32>} : memref<8x128xf32, #tpu.memory_space<vmem>>, vector<8x128xf32>,
    return
  }
  func.func @transform_0(%arg0: i32) -> (i32, i32) {
    %c0_i32 = arith.constant 0 : i32
    %c0_i32_0 = arith.constant 0 : i32
    return %arg0, %c0_i32 : i32, i32
  }
  func.func @transform_1(%arg0: i32) -> (i32, i32) {
    %c0_i32 = arith.constant 0 : i32
    %c0_i32_0 = arith.constant 0 : i32
    return %arg0, %c0_i32 : i32, i32
  }
  func.func @transform_2(%arg0: i32) -> (i32, i32) {
    %c0_i32 = arith.constant 0 : i32
    %c0_i32_0 = arith.constant 0 : i32
    %c0_i32_1 = arith.constant 0 : i32
    return %c0_i32, %c0_i32_0 : i32, i32
  }
  func.func @transform_3(%arg0: i32) -> (i32, i32) {
    %c0_i32 = arith.constant 0 : i32
    %c0_i32_0 = arith.constant 0 : i32
    %c0_i32_1 = arith.constant 0 : i32
    return %c0_i32, %c0_i32_0 : i32, i32
  }
  func.func @transform_4(%arg0: i32) -> (i32, i32) {
    %c0_i32 = arith.constant 0 : i32
    %c0_i32_0 = arith.constant 0 : i32
    %c0_i32_1 = arith.constant 0 : i32
    return %c0_i32, %c0_i32_0 : i32, i32
  }
  func.func @transform_5(%arg0: i32) -> (i32, i32) {
    %c0_i32 = arith.constant 0 : i32
    %c0_i32_0 = arith.constant 0 : i32
    %c0_i32_1 = arith.constant 0 : i32
    return %c0_i32, %c0_i32_0 : i32, i32
  }
  func.func @transform_6(%arg0: i32) -> (i32, i32) {
    %c0_i32 = arith.constant 0 : i32
    %c0_i32_0 = arith.constant 0 : i32
    %c0_i32_1 = arith.constant 0 : i32
    return %c0_i32, %c0_i32_0 : i32, i32
  }
  func.func @transform_7(%arg0: i32) -> (i32, i32) {
    %c0_i32 = arith.constant 0 : i32
    %c0_i32_0 = arith.constant 0 : i32
    %c0_i32_1 = arith.constant 0 : i32
    return %c0_i32, %c0_i32_0 : i32, i32
  }
  func.func @transform_8(%arg0: i32) -> (i32, i32) {
    %c0_i32 = arith.constant 0 : i32
    %c0_i32_0 = arith.constant 0 : i32
    %c0_i32_1 = arith.constant 0 : i32
    return %c0_i32, %c0_i32_0 : i32, i32
  }
  func.func @transform_9(%arg0: i32) -> (i32, i32) {
    %c0_i32 = arith.constant 0 : i32
    %c0_i32_0 = arith.constant 0 : i32
    %c0_i32_1 = arith.constant 0 : i32
    return %c0_i32, %c0_i32_0 : i32, i32
  }
  func.func @transform_10(%arg0: i32) -> (i32, i32) {
    %c0_i32 = arith.constant 0 : i32
    %c0_i32_0 = arith.constant 0 : i32
    return %arg0, %c0_i32 : i32, i32
  }
}

</mosaic_0001>

<llo_original>
// kernel: tpu_custom_call.1
$region0: #{tpu_custom_call.1}
  #allocation0 [shape = 'u32[]', space=smem, size = 0x4, offset = 0x4, fixed_abs, tag = 'smem constant byte address 0x4 - core index']
  #allocation1 [shape = 'u32[72,128]{1,0:T(1,128)}', space=vmem, size = 0x9000, scoped, tag = 'internal scratch']
  %s0 = inlined_call_operand.hbm [shape: f32[8,128], index: 0, kind: input, shape index: {}]
  %s1 = inlined_call_operand.hbm [shape: f32[8,128], index: 1, kind: input, shape index: {}]
  %s2 = inlined_call_operand.vmem [shape: f32[128,512], index: 2, kind: input, shape index: {}]
  %s3 = inlined_call_operand.hbm [shape: f32[1,512], index: 3, kind: input, shape index: {}]
  %s4 = inlined_call_operand.hbm [shape: f32[128,1024], index: 4, kind: input, shape index: {}]
  %s5 = inlined_call_operand.hbm [shape: f32[1,1024], index: 5, kind: input, shape index: {}]
  %s6 = inlined_call_operand.vmem [shape: f32[512,64], index: 6, kind: input, shape index: {}]
  %s7 = inlined_call_operand.vmem [shape: f32[64,512], index: 7, kind: input, shape index: {}]
  %s8 = inlined_call_operand.hbm [shape: f32[512,128], index: 8, kind: input, shape index: {}]
  %s9 = inlined_call_operand.vmem [shape: f32[1,128], index: 9, kind: input, shape index: {}]
  %s10 = inlined_call_operand.hbm [shape: f32[8,128], index: 10, kind: output, shape index: {}]
  %s11 = sld [smem:[#allocation0]]
  $region74: #{tpu_custom_call.1} parent=0
    _
  %s13 = ssub.s32 1, %s11
  %s14 = scalar_select 0, %s13, %s11
  $region1: #{tpu_custom_call.1} parent=0
    #allocation2 [shape = 'u8[4096]{0}', space=vmem, size = 0x1000, scoped, tag = 'input window, operand 0, single buffered']
    #allocation3 [shape = 's32[1]{0}', space=sflag, size = 0x4, scoped, tag = 'scoped memory for tpu_custom_call.1']
    #allocation4 [shape = 's32[1]{0}', space=sflag, size = 0x4, scoped, tag = 'scoped memory for tpu_custom_call.1']
    #allocation5 [shape = 'u8[4096]{0}', space=vmem, size = 0x1000, scoped, tag = 'input window, operand 1, single buffered']
    #allocation6 [shape = 's32[1]{0}', space=sflag, size = 0x4, scoped, tag = 'scoped memory for tpu_custom_call.1']
    #allocation7 [shape = 'u8[2048]{0}', space=vmem, size = 0x800, scoped, tag = 'input window, operand 3, single buffered']
    #allocation8 [shape = 'u8[524288]{0}', space=vmem, size = 0x80000, scoped, tag = 'input window, operand 4, single buffered']
    #allocation9 [shape = 's32[1]{0}', space=sflag, size = 0x4, scoped, tag = 'scoped memory for tpu_custom_call.1']
    #allocation10 [shape = 'u8[4096]{0}', space=vmem, size = 0x1000, scoped, tag = 'input window, operand 5, single buffered']
    #allocation11 [shape = 'u8[262144]{0}', space=vmem, size = 0x40000, scoped, tag = 'input window, operand 8, single buffered']
    #allocation12 [shape = 's32[1]{0}', space=sflag, size = 0x4, scoped, tag = 'scoped memory for tpu_custom_call.1']
    #allocation13 [shape = 'u8[4096]{0}', space=vmem, size = 0x1000, scoped, tag = 'output window, operand 0, single buffered']
    %15 = vsyncpa [#allocation3], 0
    %16 = vsyncpa [#allocation6], 0
    %17 = vsyncpa [#allocation9], 0
    %18 = vsyncpa [#allocation12], 0
    %19 = vsyncpa [#allocation4], 0
    // Predicated region
    $region2: #{tpu_custom_call.1} parent=1 // pred_check
      _
    $region3: #{tpu_custom_call.1} parent=1 // pred_check_branch
      %21 = sbr.rel (0) target = $region5
    $region4: #{tpu_custom_call.1} parent=1 // pred_region
      %23 = vsyncadd [#allocation3], 0
      %s25 = sshll.u32 %s0, 4
      %s26 = int_to_ptr.hbm [resolvable:$true] %s25
      %s27 = sshll.u32 [#allocation2], 4
      %s28 = int_to_ptr.vmem [resolvable:$true] %s27
      %30 = dma.hbm_to_vmem [thread:$0]  %s26, 128, %s28, [#allocation3]
    $region5: #{tpu_custom_call.1} parent=1 // pred_fallthru
      _
    // Predicated region
    $region6: #{tpu_custom_call.1} parent=1 // pred_check
      _
    $region7: #{tpu_custom_call.1} parent=1 // pred_check_branch
      %32 = sbr.rel (0) target = $region9
    $region8: #{tpu_custom_call.1} parent=1 // pred_region
      %34 = vsyncadd [#allocation6], 0
      %s36 = sshll.u32 %s1, 4
      %s37 = int_to_ptr.hbm [resolvable:$true] %s36
      %s38 = sshll.u32 [#allocation5], 4
      %s39 = int_to_ptr.vmem [resolvable:$true] %s38
      %41 = dma.hbm_to_vmem [thread:$0]  %s37, 128, %s39, [#allocation6]
    $region9: #{tpu_custom_call.1} parent=1 // pred_fallthru
      _
    // Predicated region
    $region10: #{tpu_custom_call.1} parent=1 // pred_check
      _
    $region11: #{tpu_custom_call.1} parent=1 // pred_check_branch
      %43 = sbr.rel (0) target = $region13
    $region12: #{tpu_custom_call.1} parent=1 // pred_region
      _
    $region13: #{tpu_custom_call.1} parent=1 // pred_fallthru
      _
    // Predicated region
    $region14: #{tpu_custom_call.1} parent=1 // pred_check
      _
    $region15: #{tpu_custom_call.1} parent=1 // pred_check_branch
      %45 = sbr.rel (0) target = $region17
    $region16: #{tpu_custom_call.1} parent=1 // pred_region
      %47 = vsyncadd [#allocation6], 0
      %s49 = sshll.u32 %s3, 4
      %s50 = int_to_ptr.hbm [resolvable:$true] %s49
      %s51 = sshll.u32 [#allocation7], 4
      %s52 = int_to_ptr.vmem [resolvable:$true] %s51
      %54 = dma.hbm_to_vmem [thread:$0]  %s50, 64, %s52, [#allocation6]
    $region17: #{tpu_custom_call.1} parent=1 // pred_fallthru
      _
    // Predicated region
    $region18: #{tpu_custom_call.1} parent=1 // pred_check
      _
    $region19: #{tpu_custom_call.1} parent=1 // pred_check_branch
      %56 = sbr.rel (0) target = $region21
    $region20: #{tpu_custom_call.1} parent=1 // pred_region
      %58 = vsyncadd [#allocation9], 0
      %s59 = sshll.u32 %s4, 4
      %s60 = int_to_ptr.hbm [resolvable:$true] %s59
      %s61 = sshll.u32 [#allocation8], 4
      %s62 = int_to_ptr.vmem [resolvable:$true] %s61
      %67 = dma.hbm_to_vmem [thread:$0]  %s60, 16384, %s62, [#allocation9], 1024, 1024, 64
    $region21: #{tpu_custom_call.1} parent=1 // pred_fallthru
      _
    // Predicated region
    $region22: #{tpu_custom_call.1} parent=1 // pred_check
      _
    $region23: #{tpu_custom_call.1} parent=1 // pred_check_branch
      %69 = sbr.rel (0) target = $region25
    $region24: #{tpu_custom_call.1} parent=1 // pred_region
      %71 = vsyncadd [#allocation9], 0
      %s73 = sshll.u32 %s5, 4
      %s74 = int_to_ptr.hbm [resolvable:$true] %s73
      %s75 = sshll.u32 [#allocation10], 4
      %s76 = int_to_ptr.vmem [resolvable:$true] %s75
      %78 = dma.hbm_to_vmem [thread:$0]  %s74, 128, %s76, [#allocation9]
    $region25: #{tpu_custom_call.1} parent=1 // pred_fallthru
      _
    // Predicated region
    $region26: #{tpu_custom_call.1} parent=1 // pred_check
      _
    $region27: #{tpu_custom_call.1} parent=1 // pred_check_branch
      %80 = sbr.rel (0) target = $region29
    $region28: #{tpu_custom_call.1} parent=1 // pred_region
      _
    $region29: #{tpu_custom_call.1} parent=1 // pred_fallthru
      _
    // Predicated region
    $region30: #{tpu_custom_call.1} parent=1 // pred_check
      _
    $region31: #{tpu_custom_call.1} parent=1 // pred_check_branch
      %82 = sbr.rel (0) target = $region33
    $region32: #{tpu_custom_call.1} parent=1 // pred_region
      _
    $region33: #{tpu_custom_call.1} parent=1 // pred_fallthru
      _
    // Predicated region
    $region34: #{tpu_custom_call.1} parent=1 // pred_check
      _
    $region35: #{tpu_custom_call.1} parent=1 // pred_check_branch
      %84 = sbr.rel (0) target = $region37
    $region36: #{tpu_custom_call.1} parent=1 // pred_region
      %86 = vsyncadd [#allocation12], 0
      %s87 = sshll.u32 %s8, 4
      %s88 = int_to_ptr.hbm [resolvable:$true] %s87
      %s89 = sshll.u32 [#allocation11], 4
      %s90 = int_to_ptr.vmem [resolvable:$true] %s89
      %95 = dma.hbm_to_vmem [thread:$0]  %s88, 8192, %s90, [#allocation12], 128, 128, 8
    $region37: #{tpu_custom_call.1} parent=1 // pred_fallthru
      _
    // Predicated region
    $region38: #{tpu_custom_call.1} parent=1 // pred_check
      _
    $region39: #{tpu_custom_call.1} parent=1 // pred_check_branch
      %97 = sbr.rel (0) target = $region41
    $region40: #{tpu_custom_call.1} parent=1 // pred_region
      _
    $region41: #{tpu_custom_call.1} parent=1 // pred_fallthru
      _
    // Predicated region
    $region42: #{tpu_custom_call.1} parent=1 // pred_check
      _
    $region43: #{tpu_custom_call.1} parent=1 // pred_check_branch
      %99 = sbr.rel (0) target = $region45
    $region44: #{tpu_custom_call.1} parent=1 // pred_region
      %101 = dma.done [#allocation3], 128
    $region45: #{tpu_custom_call.1} parent=1 // pred_fallthru
      _
    // Predicated region
    $region46: #{tpu_custom_call.1} parent=1 // pred_check
      _
    $region47: #{tpu_custom_call.1} parent=1 // pred_check_branch
      %103 = sbr.rel (0) target = $region49
    $region48: #{tpu_custom_call.1} parent=1 // pred_region
      %105 = dma.done [#allocation6], 128
    $region49: #{tpu_custom_call.1} parent=1 // pred_fallthru
      _
    // Predicated region
    $region50: #{tpu_custom_call.1} parent=1 // pred_check
      _
    $region51: #{tpu_custom_call.1} parent=1 // pred_check_branch
      %107 = sbr.rel (0) target = $region53
    $region52: #{tpu_custom_call.1} parent=1 // pred_region
      %109 = dma.done [#allocation6], 64
    $region53: #{tpu_custom_call.1} parent=1 // pred_fallthru
      _
    // Predicated region
    $region54: #{tpu_custom_call.1} parent=1 // pred_check
      _
    $region55: #{tpu_custom_call.1} parent=1 // pred_check_branch
      %111 = sbr.rel (0) target = $region57
    $region56: #{tpu_custom_call.1} parent=1 // pred_region
      %113 = dma.done [#allocation9], 16384
    $region57: #{tpu_custom_call.1} parent=1 // pred_fallthru
      _
    // Predicated region
    $region58: #{tpu_custom_call.1} parent=1 // pred_check
      _
    $region59: #{tpu_custom_call.1} parent=1 // pred_check_branch
      %115 = sbr.rel (0) target = $region61
    $region60: #{tpu_custom_call.1} parent=1 // pred_region
      %117 = dma.done [#allocation9], 128
    $region61: #{tpu_custom_call.1} parent=1 // pred_fallthru
      _
    // Predicated region
    $region62: #{tpu_custom_call.1} parent=1 // pred_check
      _
    $region63: #{tpu_custom_call.1} parent=1 // pred_check_branch
      %119 = sbr.rel (0) target = $region65
    $region64: #{tpu_custom_call.1} parent=1 // pred_region
      %121 = dma.done [#allocation12], 8192
    $region65: #{tpu_custom_call.1} parent=1 // pred_fallthru
      _
    %v122 = vld [vmem:[#allocation2] sm:$0xff]
    %v123 = vld [vmem:[#allocation5] sm:$0xff]
    %v124 = vld [vmem:[%s2] sm:$0xff]
    %v125 = vld [vmem:[%s2 + $0x8] sm:$0xff]
    %v126 = vld [vmem:[%s2 + $0x10] sm:$0xff]
    %v127 = vld [vmem:[%s2 + $0x18] sm:$0xff]
    %v128 = vld [vmem:[%s2 + $0x20] sm:$0xff]
    %v129 = vld [vmem:[%s2 + $0x28] sm:$0xff]
    %v130 = vld [vmem:[%s2 + $0x30] sm:$0xff]
    %v131 = vld [vmem:[%s2 + $0x38] sm:$0xff]
    %v132 = vld [vmem:[%s2 + $0x40] sm:$0xff]
    %v133 = vld [vmem:[%s2 + $0x48] sm:$0xff]
    %v134 = vld [vmem:[%s2 + $0x50] sm:$0xff]
    %v135 = vld [vmem:[%s2 + $0x58] sm:$0xff]
    %v136 = vld [vmem:[%s2 + $0x60] sm:$0xff]
    %v137 = vld [vmem:[%s2 + $0x68] sm:$0xff]
    %v138 = vld [vmem:[%s2 + $0x70] sm:$0xff]
    %v139 = vld [vmem:[%s2 + $0x78] sm:$0xff]
    %v140 = vld [vmem:[%s2 + $0x80] sm:$0xff]
    %v141 = vld [vmem:[%s2 + $0x88] sm:$0xff]
    %v142 = vld [vmem:[%s2 + $0x90] sm:$0xff]
    %v143 = vld [vmem:[%s2 + $0x98] sm:$0xff]
    %v144 = vld [vmem:[%s2 + $0xa0] sm:$0xff]
    %v145 = vld [vmem:[%s2 + $0xa8] sm:$0xff]
    %v146 = vld [vmem:[%s2 + $0xb0] sm:$0xff]
    %v147 = vld [vmem:[%s2 + $0xb8] sm:$0xff]
    %v148 = vld [vmem:[%s2 + $0xc0] sm:$0xff]
    %v149 = vld [vmem:[%s2 + $0xc8] sm:$0xff]
    %v150 = vld [vmem:[%s2 + $0xd0] sm:$0xff]
    %v151 = vld [vmem:[%s2 + $0xd8] sm:$0xff]
    %v152 = vld [vmem:[%s2 + $0xe0] sm:$0xff]
    %v153 = vld [vmem:[%s2 + $0xe8] sm:$0xff]
    %v154 = vld [vmem:[%s2 + $0xf0] sm:$0xff]
    %v155 = vld [vmem:[%s2 + $0xf8] sm:$0xff]
    %v156 = vld [vmem:[%s2 + $0x100] sm:$0xff]
    %v157 = vld [vmem:[%s2 + $0x108] sm:$0xff]
    %v158 = vld [vmem:[%s2 + $0x110] sm:$0xff]
    %v159 = vld [vmem:[%s2 + $0x118] sm:$0xff]
    %v160 = vld [vmem:[%s2 + $0x120] sm:$0xff]
    %v161 = vld [vmem:[%s2 + $0x128] sm:$0xff]
    %v162 = vld [vmem:[%s2 + $0x130] sm:$0xff]
    %v163 = vld [vmem:[%s2 + $0x138] sm:$0xff]
    %v164 = vld [vmem:[%s2 + $0x140] sm:$0xff]
    %v165 = vld [vmem:[%s2 + $0x148] sm:$0xff]
    %v166 = vld [vmem:[%s2 + $0x150] sm:$0xff]
    %v167 = vld [vmem:[%s2 + $0x158] sm:$0xff]
    %v168 = vld [vmem:[%s2 + $0x160] sm:$0xff]
    %v169 = vld [vmem:[%s2 + $0x168] sm:$0xff]
    %v170 = vld [vmem:[%s2 + $0x170] sm:$0xff]
    %v171 = vld [vmem:[%s2 + $0x178] sm:$0xff]
    %v172 = vld [vmem:[%s2 + $0x180] sm:$0xff]
    %v173 = vld [vmem:[%s2 + $0x188] sm:$0xff]
    %v174 = vld [vmem:[%s2 + $0x190] sm:$0xff]
    %v175 = vld [vmem:[%s2 + $0x198] sm:$0xff]
    %v176 = vld [vmem:[%s2 + $0x1a0] sm:$0xff]
    %v177 = vld [vmem:[%s2 + $0x1a8] sm:$0xff]
    %v178 = vld [vmem:[%s2 + $0x1b0] sm:$0xff]
    %v179 = vld [vmem:[%s2 + $0x1b8] sm:$0xff]
    %v180 = vld [vmem:[%s2 + $0x1c0] sm:$0xff]
    %v181 = vld [vmem:[%s2 + $0x1c8] sm:$0xff]
    %v182 = vld [vmem:[%s2 + $0x1d0] sm:$0xff]
    %v183 = vld [vmem:[%s2 + $0x1d8] sm:$0xff]
    %v184 = vld [vmem:[%s2 + $0x1e0] sm:$0xff]
    %v185 = vld [vmem:[%s2 + $0x1e8] sm:$0xff]
    %v186 = vld [vmem:[%s2 + $0x1f0] sm:$0xff]
    %v187 = vld [vmem:[%s2 + $0x1f8] sm:$0xff]
    %v188 = vld [vmem:[#allocation7] sm:$0xf]
    %v190 = vperm.slane %v188, 0
    %v191 = vperm.slane %v188, 1
    %v192 = vperm.slane %v188, 2
    %v193 = vperm.slane %v188, 3
    %198 = vmatpush.msra.mxu0 %v184
    %199 = vmatpush.msra.mxu0 %v180
    %200 = vmatpush.msra.mxu0 %v176
    %201 = vmatpush.msra.mxu0 %v172
    %202 = vmatpush.msra.mxu0 %v168
    %203 = vmatpush.msra.mxu0 %v164
    %204 = vmatpush.msra.mxu0 %v160
    %205 = vmatpush.msra.mxu0 %v156
    %206 = vmatpush.msra.mxu0 %v152
    %207 = vmatpush.msra.mxu0 %v148
    %208 = vmatpush.msra.mxu0 %v144
    %209 = vmatpush.msra.mxu0 %v140
    %210 = vmatpush.msra.mxu0 %v136
    %211 = vmatpush.msra.mxu0 %v132
    %212 = vmatpush.msra.mxu0 %v128
    %213 = vmatpush.msra.mxu0 %v124
    %214 = vmatmul.f32.gmra.mxu0 %v123
    %v215 = vpop.f32.mrf.mxu0
    %v216 = vadd.f32 %v190, %v215
    %217 = vdwg.mxu0
    %218 = vmatpush.msra.mxu0 %v185
    %219 = vmatpush.msra.mxu0 %v181
    %220 = vmatpush.msra.mxu0 %v177
    %221 = vmatpush.msra.mxu0 %v173
    %222 = vmatpush.msra.mxu0 %v169
    %223 = vmatpush.msra.mxu0 %v165
    %224 = vmatpush.msra.mxu0 %v161
    %225 = vmatpush.msra.mxu0 %v157
    %226 = vmatpush.msra.mxu0 %v153
    %227 = vmatpush.msra.mxu0 %v149
    %228 = vmatpush.msra.mxu0 %v145
    %229 = vmatpush.msra.mxu0 %v141
    %230 = vmatpush.msra.mxu0 %v137
    %231 = vmatpush.msra.mxu0 %v133
    %232 = vmatpush.msra.mxu0 %v129
    %233 = vmatpush.msra.mxu0 %v125
    %234 = vmatmul.f32.gmra.mxu0 %v123
    %v235 = vpop.f32.mrf.mxu0
    %v236 = vadd.f32 %v191, %v235
    %237 = vdwg.mxu0
    %238 = vmatpush.msra.mxu0 %v186
    %239 = vmatpush.msra.mxu0 %v182
    %240 = vmatpush.msra.mxu0 %v178
    %241 = vmatpush.msra.mxu0 %v174
    %242 = vmatpush.msra.mxu0 %v170
    %243 = vmatpush.msra.mxu0 %v166
    %244 = vmatpush.msra.mxu0 %v162
    %245 = vmatpush.msra.mxu0 %v158
    %246 = vmatpush.msra.mxu0 %v154
    %247 = vmatpush.msra.mxu0 %v150
    %248 = vmatpush.msra.mxu0 %v146
    %249 = vmatpush.msra.mxu0 %v142
    %250 = vmatpush.msra.mxu0 %v138
    %251 = vmatpush.msra.mxu0 %v134
    %252 = vmatpush.msra.mxu0 %v130
    %253 = vmatpush.msra.mxu0 %v126
    %254 = vmatmul.f32.gmra.mxu0 %v123
    %v255 = vpop.f32.mrf.mxu0
    %v256 = vadd.f32 %v192, %v255
    %257 = vdwg.mxu0
    %258 = vmatpush.msra.mxu0 %v187
    %259 = vmatpush.msra.mxu0 %v183
    %260 = vmatpush.msra.mxu0 %v179
    %261 = vmatpush.msra.mxu0 %v175
    %262 = vmatpush.msra.mxu0 %v171
    %263 = vmatpush.msra.mxu0 %v167
    %264 = vmatpush.msra.mxu0 %v163
    %265 = vmatpush.msra.mxu0 %v159
    %266 = vmatpush.msra.mxu0 %v155
    %267 = vmatpush.msra.mxu0 %v151
    %268 = vmatpush.msra.mxu0 %v147
    %269 = vmatpush.msra.mxu0 %v143
    %270 = vmatpush.msra.mxu0 %v139
    %271 = vmatpush.msra.mxu0 %v135
    %272 = vmatpush.msra.mxu0 %v131
    %273 = vmatpush.msra.mxu0 %v127
    %274 = vmatmul.f32.gmra.mxu0 %v123
    %v275 = vpop.f32.mrf.mxu0
    %v276 = vadd.f32 %v193, %v275
    %277 = vdwg.mxu0
    %v278 = vld [vmem:[#allocation8] sm:$0xff]
    %v279 = vld [vmem:[#allocation8 + $0x8] sm:$0xff]
    %v280 = vld [vmem:[#allocation8 + $0x10] sm:$0xff]
    %v281 = vld [vmem:[#allocation8 + $0x18] sm:$0xff]
    %v282 = vld [vmem:[#allocation8 + $0x20] sm:$0xff]
    %v283 = vld [vmem:[#allocation8 + $0x28] sm:$0xff]
    %v284 = vld [vmem:[#allocation8 + $0x30] sm:$0xff]
    %v285 = vld [vmem:[#allocation8 + $0x38] sm:$0xff]
    %v286 = vld [vmem:[#allocation8 + $0x40] sm:$0xff]
    %v287 = vld [vmem:[#allocation8 + $0x48] sm:$0xff]
    %v288 = vld [vmem:[#allocation8 + $0x50] sm:$0xff]
    %v289 = vld [vmem:[#allocation8 + $0x58] sm:$0xff]
    %v290 = vld [vmem:[#allocation8 + $0x60] sm:$0xff]
    %v291 = vld [vmem:[#allocation8 + $0x68] sm:$0xff]
    %v292 = vld [vmem:[#allocation8 + $0x70] sm:$0xff]
    %v293 = vld [vmem:[#allocation8 + $0x78] sm:$0xff]
    %v294 = vld [vmem:[#allocation8 + $0x80] sm:$0xff]
    %v295 = vld [vmem:[#allocation8 + $0x88] sm:$0xff]
    %v296 = vld [vmem:[#allocation8 + $0x90] sm:$0xff]
    %v297 = vld [vmem:[#allocation8 + $0x98] sm:$0xff]
    %v298 = vld [vmem:[#allocation8 + $0xa0] sm:$0xff]
    %v299 = vld [vmem:[#allocation8 + $0xa8] sm:$0xff]
    %v300 = vld [vmem:[#allocation8 + $0xb0] sm:$0xff]
    %v301 = vld [vmem:[#allocation8 + $0xb8] sm:$0xff]
    %v302 = vld [vmem:[#allocation8 + $0xc0] sm:$0xff]
    %v303 = vld [vmem:[#allocation8 + $0xc8] sm:$0xff]
    %v304 = vld [vmem:[#allocation8 + $0xd0] sm:$0xff]
    %v305 = vld [vmem:[#allocation8 + $0xd8] sm:$0xff]
    %v306 = vld [vmem:[#allocation8 + $0xe0] sm:$0xff]
    %v307 = vld [vmem:[#allocation8 + $0xe8] sm:$0xff]
    %v308 = vld [vmem:[#allocation8 + $0xf0] sm:$0xff]
    %v309 = vld [vmem:[#allocation8 + $0xf8] sm:$0xff]
    %v310 = vld [vmem:[#allocation8 + $0x100] sm:$0xff]
    %v311 = vld [vmem:[#allocation8 + $0x108] sm:$0xff]
    %v312 = vld [vmem:[#allocation8 + $0x110] sm:$0xff]
    %v313 = vld [vmem:[#allocation8 + $0x118] sm:$0xff]
    %v314 = vld [vmem:[#allocation8 + $0x120] sm:$0xff]
    %v315 = vld [vmem:[#allocation8 + $0x128] sm:$0xff]
    %v316 = vld [vmem:[#allocation8 + $0x130] sm:$0xff]
    %v317 = vld [vmem:[#allocation8 + $0x138] sm:$0xff]
    %v318 = vld [vmem:[#allocation8 + $0x140] sm:$0xff]
    %v319 = vld [vmem:[#allocation8 + $0x148] sm:$0xff]
    %v320 = vld [vmem:[#allocation8 + $0x150] sm:$0xff]
    %v321 = vld [vmem:[#allocation8 + $0x158] sm:$0xff]
    %v322 = vld [vmem:[#allocation8 + $0x160] sm:$0xff]
    %v323 = vld [vmem:[#allocation8 + $0x168] sm:$0xff]
    %v324 = vld [vmem:[#allocation8 + $0x170] sm:$0xff]
    %v325 = vld [vmem:[#allocation8 + $0x178] sm:$0xff]
    %v326 = vld [vmem:[#allocation8 + $0x180] sm:$0xff]
    %v327 = vld [vmem:[#allocation8 + $0x188] sm:$0xff]
    %v328 = vld [vmem:[#allocation8 + $0x190] sm:$0xff]
    %v329 = vld [vmem:[#allocation8 + $0x198] sm:$0xff]
    %v330 = vld [vmem:[#allocation8 + $0x1a0] sm:$0xff]
    %v331 = vld [vmem:[#allocation8 + $0x1a8] sm:$0xff]
    %v332 = vld [vmem:[#allocation8 + $0x1b0] sm:$0xff]
    %v333 = vld [vmem:[#allocation8 + $0x1b8] sm:$0xff]
    %v334 = vld [vmem:[#allocation8 + $0x1c0] sm:$0xff]
    %v335 = vld [vmem:[#allocation8 + $0x1c8] sm:$0xff]
    %v336 = vld [vmem:[#allocation8 + $0x1d0] sm:$0xff]
    %v337 = vld [vmem:[#allocation8 + $0x1d8] sm:$0xff]
    %v338 = vld [vmem:[#allocation8 + $0x1e0] sm:$0xff]
    %v339 = vld [vmem:[#allocation8 + $0x1e8] sm:$0xff]
    %v340 = vld [vmem:[#allocation8 + $0x1f0] sm:$0xff]
    %v341 = vld [vmem:[#allocation8 + $0x1f8] sm:$0xff]
    %v342 = vld [vmem:[#allocation8 + $0x200] sm:$0xff]
    %v343 = vld [vmem:[#allocation8 + $0x208] sm:$0xff]
    %v344 = vld [vmem:[#allocation8 + $0x210] sm:$0xff]
    %v345 = vld [vmem:[#allocation8 + $0x218] sm:$0xff]
    %v346 = vld [vmem:[#allocation8 + $0x220] sm:$0xff]
    %v347 = vld [vmem:[#allocation8 + $0x228] sm:$0xff]
    %v348 = vld [vmem:[#allocation8 + $0x230] sm:$0xff]
    %v349 = vld [vmem:[#allocation8 + $0x238] sm:$0xff]
    %v350 = vld [vmem:[#allocation8 + $0x240] sm:$0xff]
    %v351 = vld [vmem:[#allocation8 + $0x248] sm:$0xff]
    %v352 = vld [vmem:[#allocation8 + $0x250] sm:$0xff]
    %v353 = vld [vmem:[#allocation8 + $0x258] sm:$0xff]
    %v354 = vld [vmem:[#allocation8 + $0x260] sm:$0xff]
    %v355 = vld [vmem:[#allocation8 + $0x268] sm:$0xff]
    %v356 = vld [vmem:[#allocation8 + $0x270] sm:$0xff]
    %v357 = vld [vmem:[#allocation8 + $0x278] sm:$0xff]
    %v358 = vld [vmem:[#allocation8 + $0x280] sm:$0xff]
    %v359 = vld [vmem:[#allocation8 + $0x288] sm:$0xff]
    %v360 = vld [vmem:[#allocation8 + $0x290] sm:$0xff]
    %v361 = vld [vmem:[#allocation8 + $0x298] sm:$0xff]
    %v362 = vld [vmem:[#allocation8 + $0x2a0] sm:$0xff]
    %v363 = vld [vmem:[#allocation8 + $0x2a8] sm:$0xff]
    %v364 = vld [vmem:[#allocation8 + $0x2b0] sm:$0xff]
    %v365 = vld [vmem:[#allocation8 + $0x2b8] sm:$0xff]
    %v366 = vld [vmem:[#allocation8 + $0x2c0] sm:$0xff]
    %v367 = vld [vmem:[#allocation8 + $0x2c8] sm:$0xff]
    %v368 = vld [vmem:[#allocation8 + $0x2d0] sm:$0xff]
    %v369 = vld [vmem:[#allocation8 + $0x2d8] sm:$0xff]
    %v370 = vld [vmem:[#allocation8 + $0x2e0] sm:$0xff]
    %v371 = vld [vmem:[#allocation8 + $0x2e8] sm:$0xff]
    %v372 = vld [vmem:[#allocation8 + $0x2f0] sm:$0xff]
    %v373 = vld [vmem:[#allocation8 + $0x2f8] sm:$0xff]
    %v374 = vld [vmem:[#allocation8 + $0x300] sm:$0xff]
    %v375 = vld [vmem:[#allocation8 + $0x308] sm:$0xff]
    %v376 = vld [vmem:[#allocation8 + $0x310] sm:$0xff]
    %v377 = vld [vmem:[#allocation8 + $0x318] sm:$0xff]
    %v378 = vld [vmem:[#allocation8 + $0x320] sm:$0xff]
    %v379 = vld [vmem:[#allocation8 + $0x328] sm:$0xff]
    %v380 = vld [vmem:[#allocation8 + $0x330] sm:$0xff]
    %v381 = vld [vmem:[#allocation8 + $0x338] sm:$0xff]
    %v382 = vld [vmem:[#allocation8 + $0x340] sm:$0xff]
    %v383 = vld [vmem:[#allocation8 + $0x348] sm:$0xff]
    %v384 = vld [vmem:[#allocation8 + $0x350] sm:$0xff]
    %v385 = vld [vmem:[#allocation8 + $0x358] sm:$0xff]
    %v386 = vld [vmem:[#allocation8 + $0x360] sm:$0xff]
    %v387 = vld [vmem:[#allocation8 + $0x368] sm:$0xff]
    %v388 = vld [vmem:[#allocation8 + $0x370] sm:$0xff]
    %v389 = vld [vmem:[#allocation8 + $0x378] sm:$0xff]
    %v390 = vld [vmem:[#allocation8 + $0x380] sm:$0xff]
    %v391 = vld [vmem:[#allocation8 + $0x388] sm:$0xff]
    %v392 = vld [vmem:[#allocation8 + $0x390] sm:$0xff]
    %v393 = vld [vmem:[#allocation8 + $0x398] sm:$0xff]
    %v394 = vld [vmem:[#allocation8 + $0x3a0] sm:$0xff]
    %v395 = vld [vmem:[#allocation8 + $0x3a8] sm:$0xff]
    %v396 = vld [vmem:[#allocation8 + $0x3b0] sm:$0xff]
    %v397 = vld [vmem:[#allocation8 + $0x3b8] sm:$0xff]
    %v398 = vld [vmem:[#allocation8 + $0x3c0] sm:$0xff]
    %v399 = vld [vmem:[#allocation8 + $0x3c8] sm:$0xff]
    %v400 = vld [vmem:[#allocation8 + $0x3d0] sm:$0xff]
    %v401 = vld [vmem:[#allocation8 + $0x3d8] sm:$0xff]
    %v402 = vld [vmem:[#allocation8 + $0x3e0] sm:$0xff]
    %v403 = vld [vmem:[#allocation8 + $0x3e8] sm:$0xff]
    %v404 = vld [vmem:[#allocation8 + $0x3f0] sm:$0xff]
    %v405 = vld [vmem:[#allocation8 + $0x3f8] sm:$0xff]
    %v406 = vld [vmem:[#allocation10] sm:$0xff]
    %v408 = vperm.slane %v406, 0
    %v409 = vperm.slane %v406, 1
    %v410 = vperm.slane %v406, 2
    %v411 = vperm.slane %v406, 3
    %v412 = vperm.slane %v406, 4
    %v413 = vperm.slane %v406, 5
    %v414 = vperm.slane %v406, 6
    %v415 = vperm.slane %v406, 7
    %424 = vmatpush.msra.mxu0 %v398
    %425 = vmatpush.msra.mxu0 %v390
    %426 = vmatpush.msra.mxu0 %v382
    %427 = vmatpush.msra.mxu0 %v374
    %428 = vmatpush.msra.mxu0 %v366
    %429 = vmatpush.msra.mxu0 %v358
    %430 = vmatpush.msra.mxu0 %v350
    %431 = vmatpush.msra.mxu0 %v342
    %432 = vmatpush.msra.mxu0 %v334
    %433 = vmatpush.msra.mxu0 %v326
    %434 = vmatpush.msra.mxu0 %v318
    %435 = vmatpush.msra.mxu0 %v310
    %436 = vmatpush.msra.mxu0 %v302
    %437 = vmatpush.msra.mxu0 %v294
    %438 = vmatpush.msra.mxu0 %v286
    %439 = vmatpush.msra.mxu0 %v278
    %440 = vmatmul.f32.gmra.mxu0 %v122
    %v441 = vpop.f32.mrf.mxu0
    %v442 = vadd.f32 %v408, %v441
    %443 = vdwg.mxu0
    %444 = vmatpush.msra.mxu0 %v399
    %445 = vmatpush.msra.mxu0 %v391
    %446 = vmatpush.msra.mxu0 %v383
    %447 = vmatpush.msra.mxu0 %v375
    %448 = vmatpush.msra.mxu0 %v367
    %449 = vmatpush.msra.mxu0 %v359
    %450 = vmatpush.msra.mxu0 %v351
    %451 = vmatpush.msra.mxu0 %v343
    %452 = vmatpush.msra.mxu0 %v335
    %453 = vmatpush.msra.mxu0 %v327
    %454 = vmatpush.msra.mxu0 %v319
    %455 = vmatpush.msra.mxu0 %v311
    %456 = vmatpush.msra.mxu0 %v303
    %457 = vmatpush.msra.mxu0 %v295
    %458 = vmatpush.msra.mxu0 %v287
    %459 = vmatpush.msra.mxu0 %v279
    %460 = vmatmul.f32.gmra.mxu0 %v122
    %v461 = vpop.f32.mrf.mxu0
    %v462 = vadd.f32 %v409, %v461
    %463 = vdwg.mxu0
    %464 = vmatpush.msra.mxu0 %v400
    %465 = vmatpush.msra.mxu0 %v392
    %466 = vmatpush.msra.mxu0 %v384
    %467 = vmatpush.msra.mxu0 %v376
    %468 = vmatpush.msra.mxu0 %v368
    %469 = vmatpush.msra.mxu0 %v360
    %470 = vmatpush.msra.mxu0 %v352
    %471 = vmatpush.msra.mxu0 %v344
    %472 = vmatpush.msra.mxu0 %v336
    %473 = vmatpush.msra.mxu0 %v328
    %474 = vmatpush.msra.mxu0 %v320
    %475 = vmatpush.msra.mxu0 %v312
    %476 = vmatpush.msra.mxu0 %v304
    %477 = vmatpush.msra.mxu0 %v296
    %478 = vmatpush.msra.mxu0 %v288
    %479 = vmatpush.msra.mxu0 %v280
    %480 = vmatmul.f32.gmra.mxu0 %v122
    %v481 = vpop.f32.mrf.mxu0
    %v482 = vadd.f32 %v410, %v481
    %483 = vdwg.mxu0
    %484 = vmatpush.msra.mxu0 %v401
    %485 = vmatpush.msra.mxu0 %v393
    %486 = vmatpush.msra.mxu0 %v385
    %487 = vmatpush.msra.mxu0 %v377
    %488 = vmatpush.msra.mxu0 %v369
    %489 = vmatpush.msra.mxu0 %v361
    %490 = vmatpush.msra.mxu0 %v353
    %491 = vmatpush.msra.mxu0 %v345
    %492 = vmatpush.msra.mxu0 %v337
    %493 = vmatpush.msra.mxu0 %v329
    %494 = vmatpush.msra.mxu0 %v321
    %495 = vmatpush.msra.mxu0 %v313
    %496 = vmatpush.msra.mxu0 %v305
    %497 = vmatpush.msra.mxu0 %v297
    %498 = vmatpush.msra.mxu0 %v289
    %499 = vmatpush.msra.mxu0 %v281
    %500 = vmatmul.f32.gmra.mxu0 %v122
    %v501 = vpop.f32.mrf.mxu0
    %v502 = vadd.f32 %v411, %v501
    %503 = vdwg.mxu0
    %504 = vmatpush.msra.mxu0 %v402
    %505 = vmatpush.msra.mxu0 %v394
    %506 = vmatpush.msra.mxu0 %v386
    %507 = vmatpush.msra.mxu0 %v378
    %508 = vmatpush.msra.mxu0 %v370
    %509 = vmatpush.msra.mxu0 %v362
    %510 = vmatpush.msra.mxu0 %v354
    %511 = vmatpush.msra.mxu0 %v346
    %512 = vmatpush.msra.mxu0 %v338
    %513 = vmatpush.msra.mxu0 %v330
    %514 = vmatpush.msra.mxu0 %v322
    %515 = vmatpush.msra.mxu0 %v314
    %516 = vmatpush.msra.mxu0 %v306
    %517 = vmatpush.msra.mxu0 %v298
    %518 = vmatpush.msra.mxu0 %v290
    %519 = vmatpush.msra.mxu0 %v282
    %520 = vmatmul.f32.gmra.mxu0 %v122
    %v521 = vpop.f32.mrf.mxu0
    %v522 = vadd.f32 %v412, %v521
    %523 = vdwg.mxu0
    %524 = vmatpush.msra.mxu0 %v403
    %525 = vmatpush.msra.mxu0 %v395
    %526 = vmatpush.msra.mxu0 %v387
    %527 = vmatpush.msra.mxu0 %v379
    %528 = vmatpush.msra.mxu0 %v371
    %529 = vmatpush.msra.mxu0 %v363
    %530 = vmatpush.msra.mxu0 %v355
    %531 = vmatpush.msra.mxu0 %v347
    %532 = vmatpush.msra.mxu0 %v339
    %533 = vmatpush.msra.mxu0 %v331
    %534 = vmatpush.msra.mxu0 %v323
    %535 = vmatpush.msra.mxu0 %v315
    %536 = vmatpush.msra.mxu0 %v307
    %537 = vmatpush.msra.mxu0 %v299
    %538 = vmatpush.msra.mxu0 %v291
    %539 = vmatpush.msra.mxu0 %v283
    %540 = vmatmul.f32.gmra.mxu0 %v122
    %v541 = vpop.f32.mrf.mxu0
    %v542 = vadd.f32 %v413, %v541
    %543 = vdwg.mxu0
    %544 = vmatpush.msra.mxu0 %v404
    %545 = vmatpush.msra.mxu0 %v396
    %546 = vmatpush.msra.mxu0 %v388
    %547 = vmatpush.msra.mxu0 %v380
    %548 = vmatpush.msra.mxu0 %v372
    %549 = vmatpush.msra.mxu0 %v364
    %550 = vmatpush.msra.mxu0 %v356
    %551 = vmatpush.msra.mxu0 %v348
    %552 = vmatpush.msra.mxu0 %v340
    %553 = vmatpush.msra.mxu0 %v332
    %554 = vmatpush.msra.mxu0 %v324
    %555 = vmatpush.msra.mxu0 %v316
    %556 = vmatpush.msra.mxu0 %v308
    %557 = vmatpush.msra.mxu0 %v300
    %558 = vmatpush.msra.mxu0 %v292
    %559 = vmatpush.msra.mxu0 %v284
    %560 = vmatmul.f32.gmra.mxu0 %v122
    %v561 = vpop.f32.mrf.mxu0
    %v562 = vadd.f32 %v414, %v561
    %563 = vdwg.mxu0
    %564 = vmatpush.msra.mxu0 %v405
    %565 = vmatpush.msra.mxu0 %v397
    %566 = vmatpush.msra.mxu0 %v389
    %567 = vmatpush.msra.mxu0 %v381
    %568 = vmatpush.msra.mxu0 %v373
    %569 = vmatpush.msra.mxu0 %v365
    %570 = vmatpush.msra.mxu0 %v357
    %571 = vmatpush.msra.mxu0 %v349
    %572 = vmatpush.msra.mxu0 %v341
    %573 = vmatpush.msra.mxu0 %v333
    %574 = vmatpush.msra.mxu0 %v325
    %575 = vmatpush.msra.mxu0 %v317
    %576 = vmatpush.msra.mxu0 %v309
    %577 = vmatpush.msra.mxu0 %v301
    %578 = vmatpush.msra.mxu0 %v293
    %579 = vmatpush.msra.mxu0 %v285
    %580 = vmatmul.f32.gmra.mxu0 %v122
    %v581 = vpop.f32.mrf.mxu0
    %v582 = vadd.f32 %v415, %v581
    %583 = vdwg.mxu0
    %v584 = vmul.f32 %v216, %v442
    %v585 = vmul.f32 %v236, %v462
    %v586 = vmul.f32 %v256, %v482
    %v587 = vmul.f32 %v276, %v502
    %v588 = vld [vmem:[%s6] sm:$0xff]
    %v589 = vld [vmem:[%s6 + $0x8] sm:$0xff]
    %v590 = vld [vmem:[%s6 + $0x10] sm:$0xff]
    %v591 = vld [vmem:[%s6 + $0x18] sm:$0xff]
    %v592 = vld [vmem:[%s6 + $0x20] sm:$0xff]
    %v593 = vld [vmem:[%s6 + $0x28] sm:$0xff]
    %v594 = vld [vmem:[%s6 + $0x30] sm:$0xff]
    %v595 = vld [vmem:[%s6 + $0x38] sm:$0xff]
    %v596 = vld [vmem:[%s6 + $0x40] sm:$0xff]
    %v597 = vld [vmem:[%s6 + $0x48] sm:$0xff]
    %v598 = vld [vmem:[%s6 + $0x50] sm:$0xff]
    %v599 = vld [vmem:[%s6 + $0x58] sm:$0xff]
    %v600 = vld [vmem:[%s6 + $0x60] sm:$0xff]
    %v601 = vld [vmem:[%s6 + $0x68] sm:$0xff]
    %v602 = vld [vmem:[%s6 + $0x70] sm:$0xff]
    %v603 = vld [vmem:[%s6 + $0x78] sm:$0xff]
    %v604 = vld [vmem:[%s6 + $0x80] sm:$0xff]
    %v605 = vld [vmem:[%s6 + $0x88] sm:$0xff]
    %v606 = vld [vmem:[%s6 + $0x90] sm:$0xff]
    %v607 = vld [vmem:[%s6 + $0x98] sm:$0xff]
    %v608 = vld [vmem:[%s6 + $0xa0] sm:$0xff]
    %v609 = vld [vmem:[%s6 + $0xa8] sm:$0xff]
    %v610 = vld [vmem:[%s6 + $0xb0] sm:$0xff]
    %v611 = vld [vmem:[%s6 + $0xb8] sm:$0xff]
    %v612 = vld [vmem:[%s6 + $0xc0] sm:$0xff]
    %v613 = vld [vmem:[%s6 + $0xc8] sm:$0xff]
    %v614 = vld [vmem:[%s6 + $0xd0] sm:$0xff]
    %v615 = vld [vmem:[%s6 + $0xd8] sm:$0xff]
    %v616 = vld [vmem:[%s6 + $0xe0] sm:$0xff]
    %v617 = vld [vmem:[%s6 + $0xe8] sm:$0xff]
    %v618 = vld [vmem:[%s6 + $0xf0] sm:$0xff]
    %v619 = vld [vmem:[%s6 + $0xf8] sm:$0xff]
    %v620 = vld [vmem:[%s6 + $0x100] sm:$0xff]
    %v621 = vld [vmem:[%s6 + $0x108] sm:$0xff]
    %v622 = vld [vmem:[%s6 + $0x110] sm:$0xff]
    %v623 = vld [vmem:[%s6 + $0x118] sm:$0xff]
    %v624 = vld [vmem:[%s6 + $0x120] sm:$0xff]
    %v625 = vld [vmem:[%s6 + $0x128] sm:$0xff]
    %v626 = vld [vmem:[%s6 + $0x130] sm:$0xff]
    %v627 = vld [vmem:[%s6 + $0x138] sm:$0xff]
    %v628 = vld [vmem:[%s6 + $0x140] sm:$0xff]
    %v629 = vld [vmem:[%s6 + $0x148] sm:$0xff]
    %v630 = vld [vmem:[%s6 + $0x150] sm:$0xff]
    %v631 = vld [vmem:[%s6 + $0x158] sm:$0xff]
    %v632 = vld [vmem:[%s6 + $0x160] sm:$0xff]
    %v633 = vld [vmem:[%s6 + $0x168] sm:$0xff]
    %v634 = vld [vmem:[%s6 + $0x170] sm:$0xff]
    %v635 = vld [vmem:[%s6 + $0x178] sm:$0xff]
    %v636 = vld [vmem:[%s6 + $0x180] sm:$0xff]
    %v637 = vld [vmem:[%s6 + $0x188] sm:$0xff]
    %v638 = vld [vmem:[%s6 + $0x190] sm:$0xff]
    %v639 = vld [vmem:[%s6 + $0x198] sm:$0xff]
    %v640 = vld [vmem:[%s6 + $0x1a0] sm:$0xff]
    %v641 = vld [vmem:[%s6 + $0x1a8] sm:$0xff]
    %v642 = vld [vmem:[%s6 + $0x1b0] sm:$0xff]
    %v643 = vld [vmem:[%s6 + $0x1b8] sm:$0xff]
    %v644 = vld [vmem:[%s6 + $0x1c0] sm:$0xff]
    %v645 = vld [vmem:[%s6 + $0x1c8] sm:$0xff]
    %v646 = vld [vmem:[%s6 + $0x1d0] sm:$0xff]
    %v647 = vld [vmem:[%s6 + $0x1d8] sm:$0xff]
    %v648 = vld [vmem:[%s6 + $0x1e0] sm:$0xff]
    %v649 = vld [vmem:[%s6 + $0x1e8] sm:$0xff]
    %v650 = vld [vmem:[%s6 + $0x1f0] sm:$0xff]
    %v651 = vld [vmem:[%s6 + $0x1f8] sm:$0xff]
    %652 = vmatpush.msra.mxu0 %v603
    %653 = vmatpush.msra.mxu0 %v602
    %654 = vmatpush.msra.mxu0 %v601
    %655 = vmatpush.msra.mxu0 %v600
    %656 = vmatpush.msra.mxu0 %v599
    %657 = vmatpush.msra.mxu0 %v598
    %658 = vmatpush.msra.mxu0 %v597
    %659 = vmatpush.msra.mxu0 %v596
    %660 = vmatpush.msra.mxu0 %v595
    %661 = vmatpush.msra.mxu0 %v594
    %662 = vmatpush.msra.mxu0 %v593
    %663 = vmatpush.msra.mxu0 %v592
    %664 = vmatpush.msra.mxu0 %v591
    %665 = vmatpush.msra.mxu0 %v590
    %666 = vmatpush.msra.mxu0 %v589
    %667 = vmatpush.msra.mxu0 %v588
    %668 = vmatmul.f32.gmra.mxu0 %v584
    %v669 = vpop.f32.mrf.mxu0
    %v670 = vadd.f32 0.0, %v669
    %671 = vdwg.mxu0
    %672 = vmatpush.msra.mxu0 %v619
    %673 = vmatpush.msra.mxu0 %v618
    %674 = vmatpush.msra.mxu0 %v617
    %675 = vmatpush.msra.mxu0 %v616
    %676 = vmatpush.msra.mxu0 %v615
    %677 = vmatpush.msra.mxu0 %v614
    %678 = vmatpush.msra.mxu0 %v613
    %679 = vmatpush.msra.mxu0 %v612
    %680 = vmatpush.msra.mxu0 %v611
    %681 = vmatpush.msra.mxu0 %v610
    %682 = vmatpush.msra.mxu0 %v609
    %683 = vmatpush.msra.mxu0 %v608
    %684 = vmatpush.msra.mxu0 %v607
    %685 = vmatpush.msra.mxu0 %v606
    %686 = vmatpush.msra.mxu0 %v605
    %687 = vmatpush.msra.mxu0 %v604
    %688 = vmatmul.f32.gmra.mxu0 %v585
    %v689 = vpop.f32.mrf.mxu0
    %v690 = vadd.f32 %v670, %v689
    %691 = vdwg.mxu0
    %692 = vmatpush.msra.mxu0 %v635
    %693 = vmatpush.msra.mxu0 %v634
    %694 = vmatpush.msra.mxu0 %v633
    %695 = vmatpush.msra.mxu0 %v632
    %696 = vmatpush.msra.mxu0 %v631
    %697 = vmatpush.msra.mxu0 %v630
    %698 = vmatpush.msra.mxu0 %v629
    %699 = vmatpush.msra.mxu0 %v628
    %700 = vmatpush.msra.mxu0 %v627
    %701 = vmatpush.msra.mxu0 %v626
    %702 = vmatpush.msra.mxu0 %v625
    %703 = vmatpush.msra.mxu0 %v624
    %704 = vmatpush.msra.mxu0 %v623
    %705 = vmatpush.msra.mxu0 %v622
    %706 = vmatpush.msra.mxu0 %v621
    %707 = vmatpush.msra.mxu0 %v620
    %708 = vmatmul.f32.gmra.mxu0 %v586
    %v709 = vpop.f32.mrf.mxu0
    %v710 = vadd.f32 %v690, %v709
    %711 = vdwg.mxu0
    %712 = vmatpush.msra.mxu0 %v651
    %713 = vmatpush.msra.mxu0 %v650
    %714 = vmatpush.msra.mxu0 %v649
    %715 = vmatpush.msra.mxu0 %v648
    %716 = vmatpush.msra.mxu0 %v647
    %717 = vmatpush.msra.mxu0 %v646
    %718 = vmatpush.msra.mxu0 %v645
    %719 = vmatpush.msra.mxu0 %v644
    %720 = vmatpush.msra.mxu0 %v643
    %721 = vmatpush.msra.mxu0 %v642
    %722 = vmatpush.msra.mxu0 %v641
    %723 = vmatpush.msra.mxu0 %v640
    %724 = vmatpush.msra.mxu0 %v639
    %725 = vmatpush.msra.mxu0 %v638
    %726 = vmatpush.msra.mxu0 %v637
    %727 = vmatpush.msra.mxu0 %v636
    %728 = vmatmul.f32.gmra.mxu0 %v587
    %v729 = vpop.f32.mrf.mxu0
    %v730 = vadd.f32 %v710, %v729
    %731 = vdwg.mxu0
    %733 = vrot.lane.b32.xlu0 %v730, 112
    %v734 = vpop.permute.xlu0 %733
    %v736 = vmax.f32 %v730, %v734
    %737 = vrot.lane.b32.xlu0 %v730, 96
    %v738 = vpop.permute.xlu0 %737
    %v740 = vmax.f32 %v736, %v738
    %741 = vrot.lane.b32.xlu0 %v730, 80
    %v742 = vpop.permute.xlu0 %741
    %v744 = vmax.f32 %v740, %v742
    %746 = vrot.lane.b32.xlu0 %v744, 16
    %v747 = vpop.permute.xlu0 %746
    %749 = vrot.lane.b32.xlu0 %v744, 32
    %v750 = vpop.permute.xlu0 %749
    %752 = vrot.lane.b32.xlu0 %v744, 48
    %v753 = vpop.permute.xlu0 %752
    %vm755 = vcmask 130048
    %v756 = vsel %vm755, %v744, %v747
    %vm757 = vcmask 261120
    %v758 = vsel %vm757, %v756, %v750
    %vm759 = vcmask 392192
    %v760 = vsel %vm759, %v758, %v753
    %v761 = vsub.f32 %v730, %v760
    %v762 = vmul.f32 %v761, 1.442695
    %v763 = vpow.pop %v762
    %765 = vrot.lane.b32.xlu0 %v763, 112
    %v766 = vpop.permute.xlu0 %765
    %v768 = vadd.f32 %v763, %v766
    %769 = vrot.lane.b32.xlu0 %v763, 96
    %v770 = vpop.permute.xlu0 %769
    %v772 = vadd.f32 %v768, %v770
    %773 = vrot.lane.b32.xlu0 %v763, 80
    %v774 = vpop.permute.xlu0 %773
    %v776 = vadd.f32 %v772, %v774
    %v777 = vrcp.pop %v776
    %v778 = vmul.f32 %v776, %v777
    %v779 = vsub.f32 1.0, %v778
    %v780 = vmul.f32 %v777, %v779
    %v781 = vadd.f32 %v777, %v780
    %vm782 = vweird.f32 %v776
    %vm783 = vweird.f32 %v777
    %vm784 = vmor %vm782, %vm783
    %v785 = vsel %vm784, %v777, %v781
    %v786 = vand.u32 2147483647, %v776
    %vm787 = vcmp.eq.f32.partialorder %v786, 8.507059e+37
    %v788 = vand.u32 %v776, 2147483648
    %v789 = vor.u32 1.1754944e-38, %v788
    %v790 = vsel %vm787, %v789, %v785
    %v791 = vmul.f32 1.0, %v790
    %793 = vrot.lane.b32.xlu0 %v791, 16
    %v794 = vpop.permute.xlu0 %793
    %796 = vrot.lane.b32.xlu0 %v791, 32
    %v797 = vpop.permute.xlu0 %796
    %799 = vrot.lane.b32.xlu0 %v791, 48
    %v800 = vpop.permute.xlu0 %799
    %v802 = vsel %vm755, %v791, %v794
    %v803 = vsel %vm757, %v802, %v797
    %v804 = vsel %vm759, %v803, %v800
    %v805 = vmul.f32 %v763, %v804
    %v806 = vld [vmem:[%s7] sm:$0xff]
    %v807 = vld [vmem:[%s7 + $0x8] sm:$0xff]
    %v808 = vld [vmem:[%s7 + $0x10] sm:$0xff]
    %v809 = vld [vmem:[%s7 + $0x18] sm:$0xff]
    %v810 = vld [vmem:[%s7 + $0x20] sm:$0xff]
    %v811 = vld [vmem:[%s7 + $0x28] sm:$0xff]
    %v812 = vld [vmem:[%s7 + $0x30] sm:$0xff]
    %v813 = vld [vmem:[%s7 + $0x38] sm:$0xff]
    %v814 = vld [vmem:[%s7 + $0x40] sm:$0xff]
    %v815 = vld [vmem:[%s7 + $0x48] sm:$0xff]
    %v816 = vld [vmem:[%s7 + $0x50] sm:$0xff]
    %v817 = vld [vmem:[%s7 + $0x58] sm:$0xff]
    %v818 = vld [vmem:[%s7 + $0x60] sm:$0xff]
    %v819 = vld [vmem:[%s7 + $0x68] sm:$0xff]
    %v820 = vld [vmem:[%s7 + $0x70] sm:$0xff]
    %v821 = vld [vmem:[%s7 + $0x78] sm:$0xff]
    %v822 = vld [vmem:[%s7 + $0x80] sm:$0xff]
    %v823 = vld [vmem:[%s7 + $0x88] sm:$0xff]
    %v824 = vld [vmem:[%s7 + $0x90] sm:$0xff]
    %v825 = vld [vmem:[%s7 + $0x98] sm:$0xff]
    %v826 = vld [vmem:[%s7 + $0xa0] sm:$0xff]
    %v827 = vld [vmem:[%s7 + $0xa8] sm:$0xff]
    %v828 = vld [vmem:[%s7 + $0xb0] sm:$0xff]
    %v829 = vld [vmem:[%s7 + $0xb8] sm:$0xff]
    %v830 = vld [vmem:[%s7 + $0xc0] sm:$0xff]
    %v831 = vld [vmem:[%s7 + $0xc8] sm:$0xff]
    %v832 = vld [vmem:[%s7 + $0xd0] sm:$0xff]
    %v833 = vld [vmem:[%s7 + $0xd8] sm:$0xff]
    %v834 = vld [vmem:[%s7 + $0xe0] sm:$0xff]
    %v835 = vld [vmem:[%s7 + $0xe8] sm:$0xff]
    %v836 = vld [vmem:[%s7 + $0xf0] sm:$0xff]
    %v837 = vld [vmem:[%s7 + $0xf8] sm:$0xff]
    %vm838 = vcmask 523264
    %v840 = vsel %vm838, %v805, 0
    %842 = vmatpush.msra.mxu0 0.0
    %843 = vmatpush.msra.mxu0 0.0
    %844 = vmatpush.msra.mxu0 0.0
    %845 = vmatpush.msra.mxu0 0.0
    %846 = vmatpush.msra.mxu0 0.0
    %847 = vmatpush.msra.mxu0 0.0
    %848 = vmatpush.msra.mxu0 0.0
    %849 = vmatpush.msra.mxu0 0.0
    %850 = vmatpush.msra.mxu0 %v834
    %851 = vmatpush.msra.mxu0 %v830
    %852 = vmatpush.msra.mxu0 %v826
    %853 = vmatpush.msra.mxu0 %v822
    %854 = vmatpush.msra.mxu0 %v818
    %855 = vmatpush.msra.mxu0 %v814
    %856 = vmatpush.msra.mxu0 %v810
    %857 = vmatpush.msra.mxu0 %v806
    %858 = vmatmul.f32.gmra.mxu0 %v840
    %v859 = vpop.f32.mrf.mxu0
    %v860 = vadd.f32 0.0, %v859
    %861 = vdwg.mxu0
    %862 = vmatpush.msra.mxu0 0.0
    %863 = vmatpush.msra.mxu0 0.0
    %864 = vmatpush.msra.mxu0 0.0
    %865 = vmatpush.msra.mxu0 0.0
    %866 = vmatpush.msra.mxu0 0.0
    %867 = vmatpush.msra.mxu0 0.0
    %868 = vmatpush.msra.mxu0 0.0
    %869 = vmatpush.msra.mxu0 0.0
    %870 = vmatpush.msra.mxu0 %v835
    %871 = vmatpush.msra.mxu0 %v831
    %872 = vmatpush.msra.mxu0 %v827
    %873 = vmatpush.msra.mxu0 %v823
    %874 = vmatpush.msra.mxu0 %v819
    %875 = vmatpush.msra.mxu0 %v815
    %876 = vmatpush.msra.mxu0 %v811
    %877 = vmatpush.msra.mxu0 %v807
    %878 = vmatmul.f32.gmra.mxu0 %v840
    %v879 = vpop.f32.mrf.mxu0
    %v880 = vadd.f32 0.0, %v879
    %881 = vdwg.mxu0
    %882 = vmatpush.msra.mxu0 0.0
    %883 = vmatpush.msra.mxu0 0.0
    %884 = vmatpush.msra.mxu0 0.0
    %885 = vmatpush.msra.mxu0 0.0
    %886 = vmatpush.msra.mxu0 0.0
    %887 = vmatpush.msra.mxu0 0.0
    %888 = vmatpush.msra.mxu0 0.0
    %889 = vmatpush.msra.mxu0 0.0
    %890 = vmatpush.msra.mxu0 %v836
    %891 = vmatpush.msra.mxu0 %v832
    %892 = vmatpush.msra.mxu0 %v828
    %893 = vmatpush.msra.mxu0 %v824
    %894 = vmatpush.msra.mxu0 %v820
    %895 = vmatpush.msra.mxu0 %v816
    %896 = vmatpush.msra.mxu0 %v812
    %897 = vmatpush.msra.mxu0 %v808
    %898 = vmatmul.f32.gmra.mxu0 %v840
    %v899 = vpop.f32.mrf.mxu0
    %v900 = vadd.f32 0.0, %v899
    %901 = vdwg.mxu0
    %902 = vmatpush.msra.mxu0 0.0
    %903 = vmatpush.msra.mxu0 0.0
    %904 = vmatpush.msra.mxu0 0.0
    %905 = vmatpush.msra.mxu0 0.0
    %906 = vmatpush.msra.mxu0 0.0
    %907 = vmatpush.msra.mxu0 0.0
    %908 = vmatpush.msra.mxu0 0.0
    %909 = vmatpush.msra.mxu0 0.0
    %910 = vmatpush.msra.mxu0 %v837
    %911 = vmatpush.msra.mxu0 %v833
    %912 = vmatpush.msra.mxu0 %v829
    %913 = vmatpush.msra.mxu0 %v825
    %914 = vmatpush.msra.mxu0 %v821
    %915 = vmatpush.msra.mxu0 %v817
    %916 = vmatpush.msra.mxu0 %v813
    %917 = vmatpush.msra.mxu0 %v809
    %918 = vmatmul.f32.gmra.mxu0 %v840
    %v919 = vpop.f32.mrf.mxu0
    %v920 = vadd.f32 0.0, %v919
    %921 = vdwg.mxu0
    %v922 = vmul.f32 %v860, %v522
    %v923 = vmul.f32 %v880, %v542
    %v924 = vmul.f32 %v900, %v562
    %v925 = vmul.f32 %v920, %v582
    %v926 = vld [vmem:[#allocation11] sm:$0xff]
    %v927 = vld [vmem:[#allocation11 + $0x8] sm:$0xff]
    %v928 = vld [vmem:[#allocation11 + $0x10] sm:$0xff]
    %v929 = vld [vmem:[#allocation11 + $0x18] sm:$0xff]
    %v930 = vld [vmem:[#allocation11 + $0x20] sm:$0xff]
    %v931 = vld [vmem:[#allocation11 + $0x28] sm:$0xff]
    %v932 = vld [vmem:[#allocation11 + $0x30] sm:$0xff]
    %v933 = vld [vmem:[#allocation11 + $0x38] sm:$0xff]
    %v934 = vld [vmem:[#allocation11 + $0x40] sm:$0xff]
    %v935 = vld [vmem:[#allocation11 + $0x48] sm:$0xff]
    %v936 = vld [vmem:[#allocation11 + $0x50] sm:$0xff]
    %v937 = vld [vmem:[#allocation11 + $0x58] sm:$0xff]
    %v938 = vld [vmem:[#allocation11 + $0x60] sm:$0xff]
    %v939 = vld [vmem:[#allocation11 + $0x68] sm:$0xff]
    %v940 = vld [vmem:[#allocation11 + $0x70] sm:$0xff]
    %v941 = vld [vmem:[#allocation11 + $0x78] sm:$0xff]
    %v942 = vld [vmem:[#allocation11 + $0x80] sm:$0xff]
    %v943 = vld [vmem:[#allocation11 + $0x88] sm:$0xff]
    %v944 = vld [vmem:[#allocation11 + $0x90] sm:$0xff]
    %v945 = vld [vmem:[#allocation11 + $0x98] sm:$0xff]
    %v946 = vld [vmem:[#allocation11 + $0xa0] sm:$0xff]
    %v947 = vld [vmem:[#allocation11 + $0xa8] sm:$0xff]
    %v948 = vld [vmem:[#allocation11 + $0xb0] sm:$0xff]
    %v949 = vld [vmem:[#allocation11 + $0xb8] sm:$0xff]
    %v950 = vld [vmem:[#allocation11 + $0xc0] sm:$0xff]
    %v951 = vld [vmem:[#allocation11 + $0xc8] sm:$0xff]
    %v952 = vld [vmem:[#allocation11 + $0xd0] sm:$0xff]
    %v953 = vld [vmem:[#allocation11 + $0xd8] sm:$0xff]
    %v954 = vld [vmem:[#allocation11 + $0xe0] sm:$0xff]
    %v955 = vld [vmem:[#allocation11 + $0xe8] sm:$0xff]
    %v956 = vld [vmem:[#allocation11 + $0xf0] sm:$0xff]
    %v957 = vld [vmem:[#allocation11 + $0xf8] sm:$0xff]
    %v958 = vld [vmem:[#allocation11 + $0x100] sm:$0xff]
    %v959 = vld [vmem:[#allocation11 + $0x108] sm:$0xff]
    %v960 = vld [vmem:[#allocation11 + $0x110] sm:$0xff]
    %v961 = vld [vmem:[#allocation11 + $0x118] sm:$0xff]
    %v962 = vld [vmem:[#allocation11 + $0x120] sm:$0xff]
    %v963 = vld [vmem:[#allocation11 + $0x128] sm:$0xff]
    %v964 = vld [vmem:[#allocation11 + $0x130] sm:$0xff]
    %v965 = vld [vmem:[#allocation11 + $0x138] sm:$0xff]
    %v966 = vld [vmem:[#allocation11 + $0x140] sm:$0xff]
    %v967 = vld [vmem:[#allocation11 + $0x148] sm:$0xff]
    %v968 = vld [vmem:[#allocation11 + $0x150] sm:$0xff]
    %v969 = vld [vmem:[#allocation11 + $0x158] sm:$0xff]
    %v970 = vld [vmem:[#allocation11 + $0x160] sm:$0xff]
    %v971 = vld [vmem:[#allocation11 + $0x168] sm:$0xff]
    %v972 = vld [vmem:[#allocation11 + $0x170] sm:$0xff]
    %v973 = vld [vmem:[#allocation11 + $0x178] sm:$0xff]
    %v974 = vld [vmem:[#allocation11 + $0x180] sm:$0xff]
    %v975 = vld [vmem:[#allocation11 + $0x188] sm:$0xff]
    %v976 = vld [vmem:[#allocation11 + $0x190] sm:$0xff]
    %v977 = vld [vmem:[#allocation11 + $0x198] sm:$0xff]
    %v978 = vld [vmem:[#allocation11 + $0x1a0] sm:$0xff]
    %v979 = vld [vmem:[#allocation11 + $0x1a8] sm:$0xff]
    %v980 = vld [vmem:[#allocation11 + $0x1b0] sm:$0xff]
    %v981 = vld [vmem:[#allocation11 + $0x1b8] sm:$0xff]
    %v982 = vld [vmem:[#allocation11 + $0x1c0] sm:$0xff]
    %v983 = vld [vmem:[#allocation11 + $0x1c8] sm:$0xff]
    %v984 = vld [vmem:[#allocation11 + $0x1d0] sm:$0xff]
    %v985 = vld [vmem:[#allocation11 + $0x1d8] sm:$0xff]
    %v986 = vld [vmem:[#allocation11 + $0x1e0] sm:$0xff]
    %v987 = vld [vmem:[#allocation11 + $0x1e8] sm:$0xff]
    %v988 = vld [vmem:[#allocation11 + $0x1f0] sm:$0xff]
    %v989 = vld [vmem:[#allocation11 + $0x1f8] sm:$0xff]
    %v990 = vld [vmem:[%s9] sm:$0x1]
    %v992 = vperm.slane %v990, 0
    %994 = vmatpush.msra.mxu0 %v941
    %995 = vmatpush.msra.mxu0 %v940
    %996 = vmatpush.msra.mxu0 %v939
    %997 = vmatpush.msra.mxu0 %v938
    %998 = vmatpush.msra.mxu0 %v937
    %999 = vmatpush.msra.mxu0 %v936
    %1000 = vmatpush.msra.mxu0 %v935
    %1001 = vmatpush.msra.mxu0 %v934
    %1002 = vmatpush.msra.mxu0 %v933
    %1003 = vmatpush.msra.mxu0 %v932
    %1004 = vmatpush.msra.mxu0 %v931
    %1005 = vmatpush.msra.mxu0 %v930
    %1006 = vmatpush.msra.mxu0 %v929
    %1007 = vmatpush.msra.mxu0 %v928
    %1008 = vmatpush.msra.mxu0 %v927
    %1009 = vmatpush.msra.mxu0 %v926
    %1010 = vmatmul.f32.gmra.mxu0 %v922
    %v1011 = vpop.f32.mrf.mxu0
    %v1012 = vadd.f32 %v992, %v1011
    %1013 = vdwg.mxu0
    %1014 = vmatpush.msra.mxu0 %v957
    %1015 = vmatpush.msra.mxu0 %v956
    %1016 = vmatpush.msra.mxu0 %v955
    %1017 = vmatpush.msra.mxu0 %v954
    %1018 = vmatpush.msra.mxu0 %v953
    %1019 = vmatpush.msra.mxu0 %v952
    %1020 = vmatpush.msra.mxu0 %v951
    %1021 = vmatpush.msra.mxu0 %v950
    %1022 = vmatpush.msra.mxu0 %v949
    %1023 = vmatpush.msra.mxu0 %v948
    %1024 = vmatpush.msra.mxu0 %v947
    %1025 = vmatpush.msra.mxu0 %v946
    %1026 = vmatpush.msra.mxu0 %v945
    %1027 = vmatpush.msra.mxu0 %v944
    %1028 = vmatpush.msra.mxu0 %v943
    %1029 = vmatpush.msra.mxu0 %v942
    %1030 = vmatmul.f32.gmra.mxu0 %v923
    %v1031 = vpop.f32.mrf.mxu0
    %v1032 = vadd.f32 %v1012, %v1031
    %1033 = vdwg.mxu0
    %1034 = vmatpush.msra.mxu0 %v973
    %1035 = vmatpush.msra.mxu0 %v972
    %1036 = vmatpush.msra.mxu0 %v971
    %1037 = vmatpush.msra.mxu0 %v970
    %1038 = vmatpush.msra.mxu0 %v969
    %1039 = vmatpush.msra.mxu0 %v968
    %1040 = vmatpush.msra.mxu0 %v967
    %1041 = vmatpush.msra.mxu0 %v966
    %1042 = vmatpush.msra.mxu0 %v965
    %1043 = vmatpush.msra.mxu0 %v964
    %1044 = vmatpush.msra.mxu0 %v963
    %1045 = vmatpush.msra.mxu0 %v962
    %1046 = vmatpush.msra.mxu0 %v961
    %1047 = vmatpush.msra.mxu0 %v960
    %1048 = vmatpush.msra.mxu0 %v959
    %1049 = vmatpush.msra.mxu0 %v958
    %1050 = vmatmul.f32.gmra.mxu0 %v924
    %v1051 = vpop.f32.mrf.mxu0
    %v1052 = vadd.f32 %v1032, %v1051
    %1053 = vdwg.mxu0
    %1054 = vmatpush.msra.mxu0 %v989
    %1055 = vmatpush.msra.mxu0 %v988
    %1056 = vmatpush.msra.mxu0 %v987
    %1057 = vmatpush.msra.mxu0 %v986
    %1058 = vmatpush.msra.mxu0 %v985
    %1059 = vmatpush.msra.mxu0 %v984
    %1060 = vmatpush.msra.mxu0 %v983
    %1061 = vmatpush.msra.mxu0 %v982
    %1062 = vmatpush.msra.mxu0 %v981
    %1063 = vmatpush.msra.mxu0 %v980
    %1064 = vmatpush.msra.mxu0 %v979
    %1065 = vmatpush.msra.mxu0 %v978
    %1066 = vmatpush.msra.mxu0 %v977
    %1067 = vmatpush.msra.mxu0 %v976
    %1068 = vmatpush.msra.mxu0 %v975
    %1069 = vmatpush.msra.mxu0 %v974
    %1070 = vmatmul.f32.gmra.mxu0 %v925
    %v1071 = vpop.f32.mrf.mxu0
    %v1072 = vadd.f32 %v1052, %v1071
    %1073 = vdwg.mxu0
    %1074 = vst [vmem:[#allocation13] sm:$0xff] %v1072
    // Predicated region
    $region66: #{tpu_custom_call.1} parent=1 // pred_check
      _
    $region67: #{tpu_custom_call.1} parent=1 // pred_check_branch
      %1076 = sbr.rel (0) target = $region69
    $region68: #{tpu_custom_call.1} parent=1 // pred_region
      %1078 = vsyncadd [#allocation4], 0
      %s1080 = sshll.u32 [#allocation13], 4
      %s1081 = int_to_ptr.vmem [resolvable:$true] %s1080
      %s1082 = sshll.u32 %s10, 4
      %s1083 = int_to_ptr.hbm [resolvable:$true] %s1082
      %1085 = dma.vmem_to_hbm [thread:$0]  %s1081, 128, %s1083, [#allocation4]
    $region69: #{tpu_custom_call.1} parent=1 // pred_fallthru
      _
    // Predicated region
    $region70: #{tpu_custom_call.1} parent=1 // pred_check
      _
    $region71: #{tpu_custom_call.1} parent=1 // pred_check_branch
      %1087 = sbr.rel (0) target = $region73
    $region72: #{tpu_custom_call.1} parent=1 // pred_region
      %1089 = dma.done [#allocation4], 128
    $region73: #{tpu_custom_call.1} parent=1 // pred_fallthru
      _
    %1090 = vsyncpa [#allocation3], 1
    %1091 = vsyncpa [#allocation6], 1
    %1092 = vsyncpa [#allocation9], 1
    %1093 = vsyncpa [#allocation12], 1
    %1094 = vsyncpa [#allocation4], 1

</llo_original>
